<compile_context>
chip_gen: v7x
topology: tpu7x:2x2x1
jax: 0.10.0
libtpu: 0.0.40
codegen_flags: <defaults>
</compile_context>

<pallas_src>
import jax
import jax.numpy as jnp
from jax.experimental import pallas as pl
from jax.experimental.pallas import tpu as pltpu


def _round_up(x, m):
    return ((x + m - 1) // m) * m


def _make_eca_kernel(k_size, f_true, f_pad, approx_recip=True):
    pad = (k_size - 1) // 2
    extra = f_pad - f_true  # zero columns appended on the right of the feature axis

    def eca_kernel(w_ref, x_ref, o_ref):
        # w_ref: SMEM f32[k]      conv weight (squeezed from (1,1,k))
        # x_ref: VMEM (TB, F_pad)
        # o_ref: VMEM (TB, F_pad)
        x = x_ref[...]
        xf = x.astype(jnp.float32)

        # Scalar taps up front (SMEM loads off the vector critical path).
        w = [w_ref[j] for j in range(k_size)]

        # Row-invariant lane index, only when the appended zero columns can't
        # absorb the wrap of an edge tap (i.e. F already lane-aligned).
        need_mask = [abs(j - pad) > extra for j in range(k_size)]
        col = None
        if any(need_mask):
            col = jax.lax.broadcasted_iota(jnp.int32, (1, f_pad), 1)

        # Center tap (d == 0): no roll, no mask.
        acc = w[pad] * xf

        # Cross-correlation (PyTorch Conv1d): y[f] = sum_j w[j] * x[f + j - pad],
        # zero padded outside [0, f_true).
        for j in range(k_size):
            d = j - pad
            if d == 0:
                continue
            # shifted[f] = xf[(f + d) mod f_pad]   (lane rotation on the XLU)
            shifted = pltpu.roll(xf, (-d) % f_pad, 1)
            if need_mask[j]:
                # Single (1, F) compare per edge tap, broadcast over rows.
                if d < 0:
                    valid = col >= -d
                else:
                    valid = col < (f_true - d)
                shifted = jnp.where(valid, shifted, 0.0)
            # else: wrapped / out-of-range lanes read the appended zero columns,
            # which already reproduce the conv's zero padding.
            acc = acc + w[j] * shifted

        # sigmoid(acc) = 1 / (1 + exp(-acc)); exp and reciprocal both ride the
        # EUP slot, keeping the VALU slot free (matters on v7x).
        e = jnp.exp(-acc)
        y = pl.reciprocal(1.0 + e, approx=approx_recip)
        o_ref[...] = (xf * y).astype(o_ref.dtype)

    return eca_kernel


def eca_input_pallas(x, conv_weight, block_b=None,
                     vmem_limit_bytes=32 * 1024 * 1024,
                     approx_sigmoid=True):
    """ECA over a flat feature vector.

    x:           (B, F)
    conv_weight: (k,)  -- nn.Conv1d(1, 1, k, bias=False).weight.reshape(-1)
    returns      (B, F) = x * sigmoid(conv1d(x))
    """
    b, f = x.shape
    conv_weight = conv_weight.reshape(-1).astype(jnp.float32)
    k_size = int(conv_weight.shape[0])
    pad = (k_size - 1) // 2

    itemsize = jnp.dtype(x.dtype).itemsize
    sub = max(8, 32 // itemsize)  # sublane multiple: 8 (f32) / 16 (bf16) / 32 (i8)

    # Feature axis: keep untouched when already lane-aligned (no pad / slice
    # HBM passes).  Otherwise pad to a multiple of 128 with at least `pad`
    # spare zero columns so the conv padding is absorbed (no edge-tap masks).
    if f % 128 == 0:
        f_pad = f
    else:
        f_pad = _round_up(f, 128)
        if f_pad - f < pad:
            f_pad = _round_up(f + pad, 128)

    # Per-row VMEM footprint of one grid step: double-buffered in + out blocks
    # plus ~4 block-sized f32 temps (xf upcast, acc, rolled tap, headroom).
    per_row = f_pad * (4 * itemsize + 16)

    if block_b is None:
        budget = 24 * 1024 * 1024  # fits every generation once the limit below is set
        rows_cap = max(sub, (budget // per_row) // sub * sub)
        if b < sub:
            block_b = sub  # tiny batch: one full (sub,128)-tile block
        else:
            # >= 2 grid steps whenever possible so ("parallel",) can spread
            # tiles across both TensorCores on dual-TC chips (v7x).
            block_b = min(_round_up(pl.cdiv(b, 2), sub), rows_cap)
    else:
        block_b = max(sub, _round_up(block_b, sub))
        block_b = min(block_b, _round_up(b, sub))

    # TODO(synk): for extremely large F (per-block footprint beyond v7x's 64 MiB
    # physical VMEM even at `sub` rows) the feature axis would need halo tiling.
    vmem_limit = min(max(vmem_limit_bytes, int(per_row * block_b * 1.25)),
                     100 * 1024 * 1024)

    # Only tiny batches (b < sublane tile) get padded rows; otherwise the last
    # batch block is ragged and Pallas masks the partial stores.
    pad_rows = (sub - b) if b < sub else 0

    x_in = x
    if f_pad != f or pad_rows:
        x_in = jnp.pad(x, ((0, pad_rows), (0, f_pad - f)))

    b_in = b + pad_rows
    grid = (pl.cdiv(b_in, block_b),)

    out = pl.pallas_call(
        _make_eca_kernel(k_size, f, f_pad, approx_recip=approx_sigmoid),
        out_shape=jax.ShapeDtypeStruct((b_in, f_pad), x.dtype),
        grid=grid,
        in_specs=[
            pl.BlockSpec(memory_space=pltpu.SMEM),              # conv weight (scalars)
            pl.BlockSpec((block_b, f_pad), lambda i: (i, 0)),   # batch-tiled input
        ],
        out_specs=pl.BlockSpec((block_b, f_pad), lambda i: (i, 0)),
        compiler_params=pltpu.CompilerParams(
            dimension_semantics=("parallel",),                  # megacore over batch tiles
            vmem_limit_bytes=vmem_limit,
        ),
    )(conv_weight, x_in)

    if f_pad != f or pad_rows:
        out = out[:b, :f]
    return out


def eca_input_ref(x, conv_weight):
    """Pure-JAX reference matching the PyTorch forward."""
    b, f = x.shape
    conv_weight = conv_weight.reshape(-1).astype(jnp.float32)
    k = conv_weight.shape[0]
    pad = (k - 1) // 2
    xp = jnp.pad(x.astype(jnp.float32), ((0, 0), (pad, pad)))
    y = jnp.zeros((b, f), jnp.float32)
    for j in range(k):
        y = y + conv_weight[j] * xp[:, j:j + f]
    y = jax.nn.sigmoid(y)
    return (x.astype(jnp.float32) * y).astype(x.dtype)


if __name__ == "__main__":
    key = jax.random.PRNGKey(0)
    k1, k2, k3, k4, k5 = jax.random.split(key, 5)

    # Case 1: module-default shapes (b, nFeat) = (2, 16), k_size = 3.
    # Feature axis padded 16 -> 128 (zero columns absorb the conv padding, no
    # masks); tiny batch padded to one full sublane tile.
    x1 = jax.random.normal(k1, (2, 16), dtype=jnp.float32)
    w1 = jax.random.normal(k2, (3,), dtype=jnp.float32) * 0.5
    ref1 = eca_input_ref(x1, w1)
    out1 = jax.block_until_ready(eca_input_pallas(x1, w1, approx_sigmoid=False))
    assert jnp.allclose(out1, ref1, atol=1e-4, rtol=1e-4)
    out1a = jax.block_until_ready(eca_input_pallas(x1, w1))   # EUP-approx sigmoid path
    assert jnp.allclose(out1a, ref1, atol=2e-2, rtol=2e-2)

    # Case 2: lane-aligned F (no pad / no slice), ragged batch grid
    # (cdiv(40,16)=3 blocks, last block partial) and the masked edge-tap path.
    x2 = jax.random.normal(k3, (40, 128), dtype=jnp.float32)
    w2 = jax.random.normal(k4, (5,), dtype=jnp.float32) * 0.5
    ref2 = eca_input_ref(x2, w2)
    out2 = jax.block_until_ready(
        eca_input_pallas(x2, w2, block_b=16, approx_sigmoid=False))
    assert jnp.allclose(out2, ref2, atol=1e-4, rtol=1e-4)

    # Case 3: bf16 input, auto block sizing (b=17 > sub=16 -> 2 grid steps,
    # ragged last block with a single valid row), no feature padding.
    x3 = jax.random.normal(k5, (17, 256), dtype=jnp.bfloat16)
    w3 = jax.random.normal(k2, (3,), dtype=jnp.float32) * 0.5
    ref3 = eca_input_ref(x3, w3)
    out3 = jax.block_until_ready(eca_input_pallas(x3, w3, approx_sigmoid=False))
    assert jnp.allclose(out3.astype(jnp.float32), ref3.astype(jnp.float32),
                        atol=2e-2, rtol=2e-2)

    print("KERNEL_OK")
</pallas_src>

<mosaic_0001>
module attributes {stable_mosaic.version = 11 : i64} {
  func.func @eca_kernel(%arg0: i32, %arg1: memref<3xf32, #tpu.memory_space<smem>>, %arg2: memref<8x128xf32, #tpu.memory_space<vmem>>, %arg3: memref<8x128xf32, #tpu.memory_space<vmem>>) attributes {dimension_semantics = [#tpu.dimension_semantics<parallel>], iteration_bounds = array<i64: 1>, scalar_prefetch = 0 : i64, scratch_operands = 0 : i64, tpu.core_type = #tpu.core_type<tc>, window_params = [{transform_indices = @transform_0, window_bounds = array<i64: 3>}, {transform_indices = @transform_1, window_bounds = array<i64: 8, 128>}, {transform_indices = @transform_2, window_bounds = array<i64: 8, 128>}]} {
    %c0 = arith.constant 0 : index
    %c0_0 = arith.constant 0 : index
    %0 = vector.load %arg2[%c0, %c0_0] : memref<8x128xf32, #tpu.memory_space<vmem>>, vector<8x128xf32>
    %c0_1 = arith.constant 0 : index
    %1 = memref.load %arg1[%c0_1] : memref<3xf32, #tpu.memory_space<smem>>
    %c1 = arith.constant 1 : index
    %2 = memref.load %arg1[%c1] : memref<3xf32, #tpu.memory_space<smem>>
    %c2 = arith.constant 2 : index
    %3 = memref.load %arg1[%c2] : memref<3xf32, #tpu.memory_space<smem>>
    %4 = vector.broadcast %2 : f32 to vector<8x128xf32>
    %5 = arith.mulf %4, %0 : vector<8x128xf32>
    %c1_i32 = arith.constant 1 : i32
    %6 = tpu.dynamic_rotate %0 by %c1_i32 dim 1 : vector<8x128xf32>, i32 -> vector<8x128xf32>
    %7 = vector.broadcast %1 : f32 to vector<8x128xf32>
    %8 = arith.mulf %7, %6 : vector<8x128xf32>
    %9 = arith.addf %5, %8 : vector<8x128xf32>
    %c127_i32 = arith.constant 127 : i32
    %10 = tpu.dynamic_rotate %0 by %c127_i32 dim 1 : vector<8x128xf32>, i32 -> vector<8x128xf32>
    %11 = vector.broadcast %3 : f32 to vector<8x128xf32>
    %12 = arith.mulf %11, %10 : vector<8x128xf32>
    %13 = arith.addf %9, %12 : vector<8x128xf32>
    %cst = arith.constant 0.000000e+00 : f32
    %14 = vector.broadcast %cst : f32 to vector<8x128xf32>
    %15 = arith.subf %14, %13 : vector<8x128xf32>
    %16 = math.exp %15 : vector<8x128xf32>
    %cst_2 = arith.constant 1.000000e+00 : f32
    %17 = vector.broadcast %cst_2 : f32 to vector<8x128xf32>
    %18 = arith.addf %17, %16 : vector<8x128xf32>
    %19 = tpu.reciprocal %18 : vector<8x128xf32> -> vector<8x128xf32>
    %20 = arith.mulf %0, %19 : vector<8x128xf32>
    %c0_3 = arith.constant 0 : index
    %c0_4 = arith.constant 0 : index
    %21 = vector.load %arg3[%c0_3, %c0_4] : memref<8x128xf32, #tpu.memory_space<vmem>>, vector<8x128xf32>
    tpu.vector_store %arg3[%c0_3, %c0_4], %20 {strides = array<i32>} : memref<8x128xf32, #tpu.memory_space<vmem>>, vector<8x128xf32>,
    return
  }
  func.func @transform_0(%arg0: i32) -> i32 {
    %c0_i32 = arith.constant 0 : i32
    %c0_i32_0 = arith.constant 0 : i32
    return %c0_i32 : i32
  }
  func.func @transform_1(%arg0: i32) -> (i32, i32) {
    %c0_i32 = arith.constant 0 : i32
    %c0_i32_0 = arith.constant 0 : i32
    return %arg0, %c0_i32 : i32, i32
  }
  func.func @transform_2(%arg0: i32) -> (i32, i32) {
    %c0_i32 = arith.constant 0 : i32
    %c0_i32_0 = arith.constant 0 : i32
    return %arg0, %c0_i32 : i32, i32
  }
}

</mosaic_0001>

<llo_original>
// kernel: tpu_custom_call.1
$region0: #{tpu_custom_call.1}
  #allocation0 [shape = 'u32[]', space=smem, size = 0x4, offset = 0x4, fixed_abs, tag = 'smem constant byte address 0x4 - core index']
  #allocation1 [shape = 'u32[144,128]{1,0:T(1,128)}', space=vmem, size = 0x12000, scoped, tag = 'internal scratch']
  %s0 = inlined_call_operand.hbm [shape: f32[3], index: 0, kind: input, shape index: {}]
  %s1 = inlined_call_operand.hbm [shape: f32[8,128], index: 1, kind: input, shape index: {}]
  %s2 = inlined_call_operand.hbm [shape: f32[8,128], index: 2, kind: output, shape index: {}]
  %s3 = sld [smem:[#allocation0]]
  $region26: #{tpu_custom_call.1} parent=0
    _
  %s5 = ssub.s32 1, %s3
  %s6 = scalar_select 0, %s5, %s3
  $region1: #{tpu_custom_call.1} parent=0
    #allocation2 [shape = 'u8[512]{0}', space=smem, size = 0x200, scoped, tag = 'input window, operand 0, single buffered']
    #allocation3 [shape = 's32[1]{0}', space=sflag, size = 0x4, scoped, tag = 'scoped memory for tpu_custom_call.1']
    #allocation4 [shape = 's32[1]{0}', space=sflag, size = 0x4, scoped, tag = 'scoped memory for tpu_custom_call.1']
    #allocation5 [shape = 's32[1]{0}', space=sflag, size = 0x4, scoped, tag = 'scoped memory for tpu_custom_call.1']
    #allocation6 [shape = 'u8[4096]{0}', space=vmem, size = 0x1000, scoped, tag = 'input window, operand 1, single buffered']
    #allocation7 [shape = 'u8[4096]{0}', space=vmem, size = 0x1000, scoped, tag = 'output window, operand 0, single buffered']
    %7 = vsyncpa [#allocation5], 0
    %8 = vsyncpa [#allocation3], 0
    %9 = vsyncpa [#allocation4], 0
    // Predicated region
    $region2: #{tpu_custom_call.1} parent=1 // pred_check
      _
    $region3: #{tpu_custom_call.1} parent=1 // pred_check_branch
      %11 = sbr.rel (0) target = $region5
    $region4: #{tpu_custom_call.1} parent=1 // pred_region
      %s13 = ssub.s32 16, 16
      %14 = vsyncadd [#allocation5], %s13
      %17 = dma.hbm_to_smem %s0, 16, [#allocation2], [#allocation5]
    $region5: #{tpu_custom_call.1} parent=1 // pred_fallthru
      _
    // Predicated region
    $region6: #{tpu_custom_call.1} parent=1 // pred_check
      _
    $region7: #{tpu_custom_call.1} parent=1 // pred_check_branch
      %19 = sbr.rel (0) target = $region9
    $region8: #{tpu_custom_call.1} parent=1 // pred_region
      %s21 = ssub.s32 128, 128
      %22 = vsyncadd [#allocation3], %s21
      %s24 = sshll.u32 [#allocation6], 4
      %s25 = int_to_ptr.vmem [resolvable:$true] %s24
      %27 = dma.hbm_to_vmem [thread:$0]  %s1, 128, %s25, [#allocation3]
    $region9: #{tpu_custom_call.1} parent=1 // pred_fallthru
      _
    // Predicated region
    $region10: #{tpu_custom_call.1} parent=1 // pred_check
      _
    $region11: #{tpu_custom_call.1} parent=1 // pred_check_branch
      %29 = sbr.rel (0) target = $region13
    $region12: #{tpu_custom_call.1} parent=1 // pred_region
      %30 = dma.done [#allocation5], 16
    $region13: #{tpu_custom_call.1} parent=1 // pred_fallthru
      _
    // Predicated region
    $region14: #{tpu_custom_call.1} parent=1 // pred_check
      _
    $region15: #{tpu_custom_call.1} parent=1 // pred_check_branch
      %32 = sbr.rel (0) target = $region17
    $region16: #{tpu_custom_call.1} parent=1 // pred_region
      %33 = dma.done [#allocation3], 128
    $region17: #{tpu_custom_call.1} parent=1 // pred_fallthru
      _
    %34 = sfence
    %v35 = vld [vmem:[#allocation6] sm:$0xff]
    %s36 = sld [smem:[#allocation2]]
    %s37 = sld [smem:[#allocation2 + $0x1]]
    %s38 = sld [smem:[#allocation2 + $0x2]]
    %v39 = vstv %s37
    %v40 = vmul.f32 %v39, %v35
    %41 = vrot.lane.b32.xlu0 %v35, 1
    %v42 = vpop.permute.xlu0 %41
    %v43 = vstv %s36
    %v44 = vmul.f32 %v43, %v42
    %v45 = vadd.f32 %v40, %v44
    %46 = vrot.lane.b32.xlu0 %v35, 127
    %v47 = vpop.permute.xlu0 %46
    %v48 = vstv %s38
    %v49 = vmul.f32 %v48, %v47
    %v50 = vadd.f32 %v45, %v49
    %v51 = vsub.f32 0.0, %v50
    %v52 = vmul.f32 %v51, 1.442695
    %v53 = vpow.pop %v52
    %v54 = vadd.f32 %v53, 1.0
    %v55 = vrcp.pop %v54
    %v56 = vmul.f32 %v35, %v55
    %57 = vst [vmem:[#allocation7] sm:$0xff] %v56
    // Predicated region
    $region18: #{tpu_custom_call.1} parent=1 // pred_check
      _
    $region19: #{tpu_custom_call.1} parent=1 // pred_check_branch
      %59 = sbr.rel (0) target = $region21
    $region20: #{tpu_custom_call.1} parent=1 // pred_region
      %s61 = ssub.s32 128, 128
      %62 = vsyncadd [#allocation4], %s61
      %s64 = sshll.u32 [#allocation7], 4
      %s65 = int_to_ptr.vmem [resolvable:$true] %s64
      %67 = dma.vmem_to_hbm [thread:$0]  %s65, 128, %s2, [#allocation4]
    $region21: #{tpu_custom_call.1} parent=1 // pred_fallthru
      _
    // Predicated region
    $region22: #{tpu_custom_call.1} parent=1 // pred_check
      _
    $region23: #{tpu_custom_call.1} parent=1 // pred_check_branch
      %69 = sbr.rel (0) target = $region25
    $region24: #{tpu_custom_call.1} parent=1 // pred_region
      %70 = dma.done [#allocation4], 128
    $region25: #{tpu_custom_call.1} parent=1 // pred_fallthru
      _
    %71 = vsyncpa [#allocation3], 1
    %72 = vsyncpa [#allocation4], 1
    %73 = vsyncpa [#allocation5], 1

</llo_original>
